<compile_context>
chip_gen: v7x
topology: tpu7x:2x2x1
jax: 0.10.0
libtpu: 0.0.40
codegen_flags: <defaults>
</compile_context>

<pallas_src>
import jax
import jax.numpy as jnp
from jax.experimental import pallas as pl
from jax.experimental.pallas import tpu as pltpu

OBS_FEAT = 9 * 9          # 81
DIST = 2
H1, H2, H3, H4 = 64, 64, 64, 16
N_ACT = 4
LANES = 128
OUT_LANES = 8             # [log_policy(4) | value(1) | pad(3)]
MAX_BLOCK_B = 1024
MIN_SPLIT_B = 256         # force >=2 grid steps beyond this (v7x dual-TC)


def _mlp_kernel(obs_ref, w_ref, b_ref, out_ref):
    # obs_ref: (bb, 128) bf16  lanes = [dist(2) | feat(81) | zero pad(45)]
    # w_ref:   (6, 128, 128) bf16  packed: [w1(+2 zero rows), w2, w3, w4, Wh_head, Wd_head]
    # b_ref:   (8, 128) f32        rows:   [b1, b2, b3, b4, b_head(policy|value), 0, 0, 0]
    # out_ref: (bb, 8) f32         lanes 0..3 = log_policy, lane 4 = value, 5..7 = 0
    xb = obs_ref[...]
    b = b_ref[...]

    h = jnp.maximum(jnp.dot(xb, w_ref[0], preferred_element_type=jnp.float32)
                    + b[0:1, :], 0.0)
    h = jnp.maximum(jnp.dot(h.astype(jnp.bfloat16), w_ref[1],
                            preferred_element_type=jnp.float32) + b[1:2, :], 0.0)
    h = jnp.maximum(jnp.dot(h.astype(jnp.bfloat16), w_ref[2],
                            preferred_element_type=jnp.float32) + b[2:3, :], 0.0)
    h = jnp.maximum(jnp.dot(h.astype(jnp.bfloat16), w_ref[3],
                            preferred_element_type=jnp.float32) + b[3:4, :], 0.0)

    # concat(distance, h) @ W_head  ==  h @ W_hidden  +  obs @ W_dist_padded
    head = (jnp.dot(h.astype(jnp.bfloat16), w_ref[4], preferred_element_type=jnp.float32)
            + jnp.dot(xb, w_ref[5], preferred_element_type=jnp.float32)
            + b[4:5, :])                                 # (bb, 128)

    # masked log_softmax over the first N_ACT lanes, value lives in lane N_ACT
    lane = jax.lax.broadcasted_iota(jnp.int32, head.shape, 1)
    is_logit = lane < N_ACT
    m = jnp.max(jnp.where(is_logit, head, -jnp.inf), axis=-1, keepdims=True)
    s = head - m
    p = jnp.where(is_logit, jnp.exp(s), 0.0)
    log_z = jnp.log(jnp.sum(p, axis=-1, keepdims=True))
    log_policy = s - log_z

    full = jnp.where(is_logit, log_policy,
                     jnp.where(lane == N_ACT, head, 0.0))
    out_ref[...] = full[:, :OUT_LANES]                   # narrow writeback


def _round_up(x, m):
    return -(-x // m) * m


def _choose_blocking(B):
    num_blocks = pl.cdiv(B, MAX_BLOCK_B)
    if B >= MIN_SPLIT_B:
        num_blocks = max(num_blocks, 2)   # use both TensorCores on v7x
    block_b = _round_up(pl.cdiv(B, num_blocks), 16)      # bf16 sublane packing
    return block_b, num_blocks


def my_model_forward(obs, packed):
    """obs: (B, 2 + 81). Returns (log_policy (B, 4), value (B, 1))."""
    w_slab, b_slab = packed
    B, F = obs.shape

    block_b, num_blocks = _choose_blocking(B)
    b_pad = block_b * num_blocks

    # single fused pad: batch rows -> b_pad, feature lanes (83) -> 128, then bf16
    obs_p = jnp.pad(obs.astype(jnp.float32),
                    ((0, b_pad - B), (0, LANES - F))).astype(jnp.bfloat16)

    cost = pl.CostEstimate(
        flops=12 * b_pad * LANES * LANES,          # 6 matmuls x 2 flops/MAC
        transcendentals=b_pad * (LANES + 1),       # exp over head lanes + log
        bytes_accessed=(b_pad * LANES * 2)         # bf16 obs in
                       + (b_pad * OUT_LANES * 4)   # f32 narrow out
                       + (6 * LANES * LANES * 2)   # bf16 weight slab
                       + (8 * LANES * 4),          # f32 bias slab
    )

    out = pl.pallas_call(
        _mlp_kernel,
        out_shape=jax.ShapeDtypeStruct((b_pad, OUT_LANES), jnp.float32),
        grid=(num_blocks,),
        in_specs=[
            pl.BlockSpec((block_b, LANES), lambda i: (i, 0)),
            pl.BlockSpec((6, LANES, LANES), lambda i: (0, 0, 0)),   # weights resident
            pl.BlockSpec((8, LANES), lambda i: (0, 0)),             # biases resident
        ],
        out_specs=pl.BlockSpec((block_b, OUT_LANES), lambda i: (i, 0)),
        compiler_params=pltpu.CompilerParams(
            dimension_semantics=("parallel",)),
        cost_estimate=cost,
    )(obs_p, w_slab, b_slab)

    policy = out[:B, :N_ACT]
    value = out[:B, N_ACT:N_ACT + 1]
    return policy, value


def init_raw_params(key):
    """PyTorch-Linear-style init. Weights stored as (in, out), biases as (out,)."""
    def linear(k, fan_in, fan_out):
        kw, kb = jax.random.split(k)
        bound = 1.0 / jnp.sqrt(fan_in)
        w = jax.random.uniform(kw, (fan_in, fan_out), jnp.float32, -bound, bound)
        b = jax.random.uniform(kb, (fan_out,), jnp.float32, -bound, bound)
        return w, b

    keys = jax.random.split(key, 6)
    w1, b1 = linear(keys[0], OBS_FEAT, H1)
    w2, b2 = linear(keys[1], H1, H2)
    w3, b3 = linear(keys[2], H2, H3)
    w4, b4 = linear(keys[3], H3, H4)
    wp, bp = linear(keys[4], DIST + H4, N_ACT)   # input order = [distance, hidden]
    wv, bv = linear(keys[5], DIST + H4, 1)
    return dict(w1=w1, b1=b1, w2=w2, b2=b2, w3=w3, b3=b3, w4=w4, b4=b4,
                wp=wp, bp=bp, wv=wv, bv=bv)


def pack_params(raw):
    """Pack everything into one bf16 weight slab + one f32 bias slab."""
    w = jnp.zeros((6, LANES, LANES), jnp.float32)
    # fc1 consumes the whole obs row: 2 leading zero rows for the distance lanes
    w = w.at[0, DIST:DIST + OBS_FEAT, :H1].set(raw["w1"])
    w = w.at[1, :H1, :H2].set(raw["w2"])
    w = w.at[2, :H2, :H3].set(raw["w3"])
    w = w.at[3, :H3, :H4].set(raw["w4"])
    # fused policy|value head, split into hidden part (layer 4) and distance part (layer 5)
    w = w.at[4, :H4, :N_ACT].set(raw["wp"][DIST:, :])
    w = w.at[4, :H4, N_ACT:N_ACT + 1].set(raw["wv"][DIST:, :])
    w = w.at[5, :DIST, :N_ACT].set(raw["wp"][:DIST, :])
    w = w.at[5, :DIST, N_ACT:N_ACT + 1].set(raw["wv"][:DIST, :])

    b = jnp.zeros((8, LANES), jnp.float32)
    b = b.at[0, :H1].set(raw["b1"])
    b = b.at[1, :H2].set(raw["b2"])
    b = b.at[2, :H3].set(raw["b3"])
    b = b.at[3, :H4].set(raw["b4"])
    b = b.at[4, :N_ACT].set(raw["bp"])
    b = b.at[4, N_ACT].set(raw["bv"][0])
    return w.astype(jnp.bfloat16), b


def reference_forward(obs, raw):
    """Pure-JAX f32 reference matching the PyTorch module."""
    obs = obs.astype(jnp.float32)
    dist, x = obs[:, :DIST], obs[:, DIST:]
    h = jax.nn.relu(x @ raw["w1"] + raw["b1"])
    h = jax.nn.relu(h @ raw["w2"] + raw["b2"])
    h = jax.nn.relu(h @ raw["w3"] + raw["b3"])
    h = jax.nn.relu(h @ raw["w4"] + raw["b4"])
    cat = jnp.concatenate([dist, h], axis=1)
    policy = jax.nn.log_softmax(cat @ raw["wp"] + raw["bp"], axis=1)
    value = cat @ raw["wv"] + raw["bv"]
    return policy, value


if __name__ == "__main__":
    key = jax.random.PRNGKey(0)
    k_obs, k_par = jax.random.split(key)

    raw = init_raw_params(k_par)
    packed = pack_params(raw)
    fwd = jax.jit(my_model_forward)

    # small batch (single grid step)
    B = 8
    obs = jax.random.normal(k_obs, (B, DIST + OBS_FEAT), jnp.float32)
    policy, value = fwd(obs, packed)
    jax.block_until_ready((policy, value))

    assert policy.shape == (B, N_ACT) and value.shape == (B, 1)
    # log_softmax sanity: rows of exp(policy) sum to 1
    assert jnp.allclose(jnp.sum(jnp.exp(policy), axis=1), 1.0, atol=1e-5)
    # numerical parity vs pure-JAX f32 reference (bf16 matmul operands => loose tol)
    ref_p, ref_v = reference_forward(obs, raw)
    assert jnp.allclose(policy, ref_p, atol=5e-2, rtol=5e-2)
    assert jnp.allclose(value, ref_v, atol=5e-2, rtol=5e-2)

    # mid-size batch (exercises the multi-block / dual-TC grid path)
    B2 = 300
    obs2 = jax.random.normal(jax.random.PRNGKey(1), (B2, DIST + OBS_FEAT), jnp.float32)
    policy2, value2 = fwd(obs2, packed)
    jax.block_until_ready((policy2, value2))
    ref_p2, ref_v2 = reference_forward(obs2, raw)
    assert policy2.shape == (B2, N_ACT) and value2.shape == (B2, 1)
    assert jnp.allclose(policy2, ref_p2, atol=5e-2, rtol=5e-2)
    assert jnp.allclose(value2, ref_v2, atol=5e-2, rtol=5e-2)

    print("KERNEL_OK")
</pallas_src>

<mosaic_0001>
module attributes {stable_mosaic.version = 11 : i64} {
  func.func @_mlp_kernel(%arg0: i32, %arg1: memref<16x128xbf16, #tpu.memory_space<vmem>>, %arg2: memref<6x128x128xbf16, #tpu.memory_space<vmem>>, %arg3: memref<8x128xf32, #tpu.memory_space<vmem>>, %arg4: memref<16x8xf32, #tpu.memory_space<vmem>>) attributes {dimension_semantics = [#tpu.dimension_semantics<parallel>], iteration_bounds = array<i64: 1>, scalar_prefetch = 0 : i64, scratch_operands = 0 : i64, tpu.core_type = #tpu.core_type<tc>, window_params = [{transform_indices = @transform_0, window_bounds = array<i64: 16, 128>}, {pipeline_mode = #tpu.pipeline_mode<synchronous>, transform_indices = @transform_1, window_bounds = array<i64: 6, 128, 128>}, {pipeline_mode = #tpu.pipeline_mode<synchronous>, transform_indices = @transform_2, window_bounds = array<i64: 8, 128>}, {transform_indices = @transform_3, window_bounds = array<i64: 16, 8>}]} {
    %c0 = arith.constant 0 : index
    %c0_0 = arith.constant 0 : index
    %0 = vector.load %arg1[%c0, %c0_0] : memref<16x128xbf16, #tpu.memory_space<vmem>>, vector<16x128xbf16>
    %c0_1 = arith.constant 0 : index
    %c0_2 = arith.constant 0 : index
    %1 = vector.load %arg3[%c0_1, %c0_2] : memref<8x128xf32, #tpu.memory_space<vmem>>, vector<8x128xf32>
    %c0_3 = arith.constant 0 : index
    %c0_4 = arith.constant 0 : index
    %c0_5 = arith.constant 0 : index
    %2 = vector.load %arg2[%c0_3, %c0_4, %c0_5] : memref<6x128x128xbf16, #tpu.memory_space<vmem>>, vector<1x128x128xbf16>
    %3 = vector.shape_cast %2 : vector<1x128x128xbf16> to vector<128x128xbf16>
    %cst = arith.constant dense<0.000000e+00> : vector<16x128xf32>
    %4 = tpu.matmul %0, %3, %cst {dimension_numbers = #tpu.dot_dimension_numbers<[1], [0], [0], [1], [0, 0, 1, 1], [], []>} : vector<16x128xbf16>, vector<128x128xbf16>, vector<16x128xf32> -> vector<16x128xf32>
    %5 = vector.extract_strided_slice %1 {offsets = [0, 0], sizes = [1, 128], strides = [1, 1]} : vector<8x128xf32> to vector<1x128xf32>
    %6 = vector.broadcast %5 : vector<1x128xf32> to vector<16x128xf32>
    %7 = arith.addf %4, %6 : vector<16x128xf32>
    %cst_6 = arith.constant 0.000000e+00 : f32
    %8 = vector.broadcast %cst_6 : f32 to vector<16x128xf32>
    %9 = arith.maximumf %7, %8 : vector<16x128xf32>
    %10 = arith.truncf %9 : vector<16x128xf32> to vector<16x128xbf16>
    %c1 = arith.constant 1 : index
    %c0_7 = arith.constant 0 : index
    %c0_8 = arith.constant 0 : index
    %11 = vector.load %arg2[%c1, %c0_7, %c0_8] : memref<6x128x128xbf16, #tpu.memory_space<vmem>>, vector<1x128x128xbf16>
    %12 = vector.shape_cast %11 : vector<1x128x128xbf16> to vector<128x128xbf16>
    %cst_9 = arith.constant dense<0.000000e+00> : vector<16x128xf32>
    %13 = tpu.matmul %10, %12, %cst_9 {dimension_numbers = #tpu.dot_dimension_numbers<[1], [0], [0], [1], [0, 0, 1, 1], [], []>} : vector<16x128xbf16>, vector<128x128xbf16>, vector<16x128xf32> -> vector<16x128xf32>
    %14 = vector.extract_strided_slice %1 {offsets = [1, 0], sizes = [1, 128], strides = [1, 1]} : vector<8x128xf32> to vector<1x128xf32>
    %15 = vector.broadcast %14 : vector<1x128xf32> to vector<16x128xf32>
    %16 = arith.addf %13, %15 : vector<16x128xf32>
    %cst_10 = arith.constant 0.000000e+00 : f32
    %17 = vector.broadcast %cst_10 : f32 to vector<16x128xf32>
    %18 = arith.maximumf %16, %17 : vector<16x128xf32>
    %19 = arith.truncf %18 : vector<16x128xf32> to vector<16x128xbf16>
    %c2 = arith.constant 2 : index
    %c0_11 = arith.constant 0 : index
    %c0_12 = arith.constant 0 : index
    %20 = vector.load %arg2[%c2, %c0_11, %c0_12] : memref<6x128x128xbf16, #tpu.memory_space<vmem>>, vector<1x128x128xbf16>
    %21 = vector.shape_cast %20 : vector<1x128x128xbf16> to vector<128x128xbf16>
    %cst_13 = arith.constant dense<0.000000e+00> : vector<16x128xf32>
    %22 = tpu.matmul %19, %21, %cst_13 {dimension_numbers = #tpu.dot_dimension_numbers<[1], [0], [0], [1], [0, 0, 1, 1], [], []>} : vector<16x128xbf16>, vector<128x128xbf16>, vector<16x128xf32> -> vector<16x128xf32>
    %23 = vector.extract_strided_slice %1 {offsets = [2, 0], sizes = [1, 128], strides = [1, 1]} : vector<8x128xf32> to vector<1x128xf32>
    %24 = vector.broadcast %23 : vector<1x128xf32> to vector<16x128xf32>
    %25 = arith.addf %22, %24 : vector<16x128xf32>
    %cst_14 = arith.constant 0.000000e+00 : f32
    %26 = vector.broadcast %cst_14 : f32 to vector<16x128xf32>
    %27 = arith.maximumf %25, %26 : vector<16x128xf32>
    %28 = arith.truncf %27 : vector<16x128xf32> to vector<16x128xbf16>
    %c3 = arith.constant 3 : index
    %c0_15 = arith.constant 0 : index
    %c0_16 = arith.constant 0 : index
    %29 = vector.load %arg2[%c3, %c0_15, %c0_16] : memref<6x128x128xbf16, #tpu.memory_space<vmem>>, vector<1x128x128xbf16>
    %30 = vector.shape_cast %29 : vector<1x128x128xbf16> to vector<128x128xbf16>
    %cst_17 = arith.constant dense<0.000000e+00> : vector<16x128xf32>
    %31 = tpu.matmul %28, %30, %cst_17 {dimension_numbers = #tpu.dot_dimension_numbers<[1], [0], [0], [1], [0, 0, 1, 1], [], []>} : vector<16x128xbf16>, vector<128x128xbf16>, vector<16x128xf32> -> vector<16x128xf32>
    %32 = vector.extract_strided_slice %1 {offsets = [3, 0], sizes = [1, 128], strides = [1, 1]} : vector<8x128xf32> to vector<1x128xf32>
    %33 = vector.broadcast %32 : vector<1x128xf32> to vector<16x128xf32>
    %34 = arith.addf %31, %33 : vector<16x128xf32>
    %cst_18 = arith.constant 0.000000e+00 : f32
    %35 = vector.broadcast %cst_18 : f32 to vector<16x128xf32>
    %36 = arith.maximumf %34, %35 : vector<16x128xf32>
    %37 = arith.truncf %36 : vector<16x128xf32> to vector<16x128xbf16>
    %c4 = arith.constant 4 : index
    %c0_19 = arith.constant 0 : index
    %c0_20 = arith.constant 0 : index
    %38 = vector.load %arg2[%c4, %c0_19, %c0_20] : memref<6x128x128xbf16, #tpu.memory_space<vmem>>, vector<1x128x128xbf16>
    %39 = vector.shape_cast %38 : vector<1x128x128xbf16> to vector<128x128xbf16>
    %cst_21 = arith.constant dense<0.000000e+00> : vector<16x128xf32>
    %40 = tpu.matmul %37, %39, %cst_21 {dimension_numbers = #tpu.dot_dimension_numbers<[1], [0], [0], [1], [0, 0, 1, 1], [], []>} : vector<16x128xbf16>, vector<128x128xbf16>, vector<16x128xf32> -> vector<16x128xf32>
    %c5 = arith.constant 5 : index
    %c0_22 = arith.constant 0 : index
    %c0_23 = arith.constant 0 : index
    %41 = vector.load %arg2[%c5, %c0_22, %c0_23] : memref<6x128x128xbf16, #tpu.memory_space<vmem>>, vector<1x128x128xbf16>
    %42 = vector.shape_cast %41 : vector<1x128x128xbf16> to vector<128x128xbf16>
    %cst_24 = arith.constant dense<0.000000e+00> : vector<16x128xf32>
    %43 = tpu.matmul %0, %42, %cst_24 {dimension_numbers = #tpu.dot_dimension_numbers<[1], [0], [0], [1], [0, 0, 1, 1], [], []>} : vector<16x128xbf16>, vector<128x128xbf16>, vector<16x128xf32> -> vector<16x128xf32>
    %44 = arith.addf %40, %43 : vector<16x128xf32>
    %45 = vector.extract_strided_slice %1 {offsets = [4, 0], sizes = [1, 128], strides = [1, 1]} : vector<8x128xf32> to vector<1x128xf32>
    %46 = vector.broadcast %45 : vector<1x128xf32> to vector<16x128xf32>
    %47 = arith.addf %44, %46 : vector<16x128xf32>
    %48 = tpu.iota {dimensions = array<i32: 1>} : vector<16x128xi32>
    %c4_i32 = arith.constant 4 : i32
    %49 = vector.broadcast %c4_i32 : i32 to vector<16x128xi32>
    %50 = arith.cmpi slt, %48, %49 : vector<16x128xi32>
    %cst_25 = arith.constant 0xFF800000 : f32
    %51 = vector.broadcast %cst_25 : f32 to vector<16x128xf32>
    %52 = arith.select %50, %47, %51 : vector<16x128xi1>, vector<16x128xf32>
    %cst_26 = arith.constant dense<0xFF800000> : vector<16xf32>
    %53 = vector.multi_reduction <maximumf>, %52, %cst_26 [1] : vector<16x128xf32> to vector<16xf32>
    %54 = vector.shape_cast %53 : vector<16xf32> to vector<16x1xf32>
    %55 = vector.broadcast %54 : vector<16x1xf32> to vector<16x128xf32>
    %56 = arith.subf %47, %55 : vector<16x128xf32>
    %57 = math.exp %56 : vector<16x128xf32>
    %cst_27 = arith.constant 0.000000e+00 : f32
    %58 = vector.broadcast %cst_27 : f32 to vector<16x128xf32>
    %59 = arith.select %50, %57, %58 : vector<16x128xi1>, vector<16x128xf32>
    %cst_28 = arith.constant dense<0.000000e+00> : vector<16xf32>
    %60 = vector.multi_reduction <add>, %59, %cst_28 [1] : vector<16x128xf32> to vector<16xf32>
    %61 = vector.shape_cast %60 : vector<16xf32> to vector<16x1xf32>
    %62 = math.log %61 : vector<16x1xf32>
    %63 = vector.broadcast %62 : vector<16x1xf32> to vector<16x128xf32>
    %64 = arith.subf %56, %63 : vector<16x128xf32>
    %c4_i32_29 = arith.constant 4 : i32
    %65 = vector.broadcast %c4_i32_29 : i32 to vector<16x128xi32>
    %66 = arith.cmpi eq, %48, %65 : vector<16x128xi32>
    %cst_30 = arith.constant 0.000000e+00 : f32
    %67 = vector.broadcast %cst_30 : f32 to vector<16x128xf32>
    %68 = arith.select %66, %47, %67 : vector<16x128xi1>, vector<16x128xf32>
    %69 = arith.select %50, %64, %68 : vector<16x128xi1>, vector<16x128xf32>
    %70 = vector.extract_strided_slice %69 {offsets = [0, 0], sizes = [16, 8], strides = [1, 1]} : vector<16x128xf32> to vector<16x8xf32>
    %c0_31 = arith.constant 0 : index
    %c0_32 = arith.constant 0 : index
    %71 = vector.load %arg4[%c0_31, %c0_32] : memref<16x8xf32, #tpu.memory_space<vmem>>, vector<16x8xf32>
    tpu.vector_store %arg4[%c0_31, %c0_32], %70 {strides = array<i32>} : memref<16x8xf32, #tpu.memory_space<vmem>>, vector<16x8xf32>,
    return
  }
  func.func @transform_0(%arg0: i32) -> (i32, i32) {
    %c0_i32 = arith.constant 0 : i32
    %c0_i32_0 = arith.constant 0 : i32
    return %arg0, %c0_i32 : i32, i32
  }
  func.func @transform_1(%arg0: i32) -> (i32, i32, i32) {
    %c0_i32 = arith.constant 0 : i32
    %c0_i32_0 = arith.constant 0 : i32
    %c0_i32_1 = arith.constant 0 : i32
    %c0_i32_2 = arith.constant 0 : i32
    return %c0_i32, %c0_i32_0, %c0_i32_1 : i32, i32, i32
  }
  func.func @transform_2(%arg0: i32) -> (i32, i32) {
    %c0_i32 = arith.constant 0 : i32
    %c0_i32_0 = arith.constant 0 : i32
    %c0_i32_1 = arith.constant 0 : i32
    return %c0_i32, %c0_i32_0 : i32, i32
  }
  func.func @transform_3(%arg0: i32) -> (i32, i32) {
    %c0_i32 = arith.constant 0 : i32
    %c0_i32_0 = arith.constant 0 : i32
    return %arg0, %c0_i32 : i32, i32
  }
}

</mosaic_0001>

<llo_original>
// kernel: my_model_forward.1
$region0: #{my_model_forward.1}
  #allocation0 [shape = 'u32[]', space=smem, size = 0x4, offset = 0x4, fixed_abs, tag = 'smem constant byte address 0x4 - core index']
  #allocation1 [shape = 'u32[144,128]{1,0:T(1,128)}', space=vmem, size = 0x12000, scoped, tag = 'internal scratch']
  %s0 = inlined_call_operand.vmem [shape: bf16[16,128], index: 0, kind: input, shape index: {}]
  %s1 = inlined_call_operand.hbm [shape: bf16[6,128,128], index: 1, kind: input, shape index: {}]
  %s2 = inlined_call_operand.vmem [shape: f32[8,128], index: 2, kind: input, shape index: {}]
  %s3 = inlined_call_operand.vmem [shape: f32[16,8], index: 3, kind: output, shape index: {}]
  %s4 = sld [smem:[#allocation0]]
  $region26: #{my_model_forward.1} parent=0
    _
  %s6 = ssub.s32 1, %s4
  %s7 = scalar_select 0, %s6, %s4
  $region1: #{my_model_forward.1} parent=0
    #allocation2 [shape = 'u8[196608]{0}', space=vmem, size = 0x30000, scoped, tag = 'input window, operand 1, single buffered']
    #allocation3 [shape = 's32[1]{0}', space=sflag, size = 0x4, scoped, tag = 'scoped memory for my_model_forward.1']
    %8 = vsyncpa [#allocation3], 0
    // Predicated region
    $region2: #{my_model_forward.1} parent=1 // pred_check
      _
    $region3: #{my_model_forward.1} parent=1 // pred_check_branch
      %10 = sbr.rel (0) target = $region5
    $region4: #{my_model_forward.1} parent=1 // pred_region
      _
    $region5: #{my_model_forward.1} parent=1 // pred_fallthru
      _
    // Predicated region
    $region6: #{my_model_forward.1} parent=1 // pred_check
      _
    $region7: #{my_model_forward.1} parent=1 // pred_check_branch
      %12 = sbr.rel (0) target = $region9
    $region8: #{my_model_forward.1} parent=1 // pred_region
      %s14 = ssub.s32 6144, 6144
      %15 = vsyncadd [#allocation3], %s14
      %s16 = sshll.u32 [#allocation2], 4
      %s17 = int_to_ptr.vmem [resolvable:$true] %s16
      %22 = dma.hbm_to_vmem [thread:$0]  %s1, 6144, %s17, [#allocation3], 64, 64, 4
    $region9: #{my_model_forward.1} parent=1 // pred_fallthru
      _
    // Predicated region
    $region10: #{my_model_forward.1} parent=1 // pred_check
      _
    $region11: #{my_model_forward.1} parent=1 // pred_check_branch
      %24 = sbr.rel (0) target = $region13
    $region12: #{my_model_forward.1} parent=1 // pred_region
      _
    $region13: #{my_model_forward.1} parent=1 // pred_fallthru
      _
    // Predicated region
    $region14: #{my_model_forward.1} parent=1 // pred_check
      _
    $region15: #{my_model_forward.1} parent=1 // pred_check_branch
      %26 = sbr.rel (0) target = $region17
    $region16: #{my_model_forward.1} parent=1 // pred_region
      %27 = dma.done [#allocation3], 6144
    $region17: #{my_model_forward.1} parent=1 // pred_fallthru
      _
    %v29 = vld [vmem:[%s0] sm:$0xf]
    %v30 = vld [vmem:[%s0 + $0x4] sm:$0xf]
    %v31 = vld [vmem:[%s2] sm:$0xff]
    %v32 = vld [vmem:[#allocation2] sm:$0xf]
    %v33 = vld [vmem:[#allocation2 + $0x4] sm:$0xf]
    %v34 = vld [vmem:[#allocation2 + $0x8] sm:$0xf]
    %v35 = vld [vmem:[#allocation2 + $0xc] sm:$0xf]
    %v36 = vld [vmem:[#allocation2 + $0x10] sm:$0xf]
    %v37 = vld [vmem:[#allocation2 + $0x14] sm:$0xf]
    %v38 = vld [vmem:[#allocation2 + $0x18] sm:$0xf]
    %v39 = vld [vmem:[#allocation2 + $0x1c] sm:$0xf]
    %v40 = vld [vmem:[#allocation2 + $0x20] sm:$0xf]
    %v41 = vld [vmem:[#allocation2 + $0x24] sm:$0xf]
    %v42 = vld [vmem:[#allocation2 + $0x28] sm:$0xf]
    %v43 = vld [vmem:[#allocation2 + $0x2c] sm:$0xf]
    %v44 = vld [vmem:[#allocation2 + $0x30] sm:$0xf]
    %v45 = vld [vmem:[#allocation2 + $0x34] sm:$0xf]
    %v46 = vld [vmem:[#allocation2 + $0x38] sm:$0xf]
    %v47 = vld [vmem:[#allocation2 + $0x3c] sm:$0xf]
    %v48 = vlaneseq
    %v49 = vshrl.u32 %v48, 7
    %v50 = vsub.s32 0, %v49
    %v51 = vrot.slane %v31, %v50
    %v54 = vunpack.c.l.b16 %v29
    %v55 = vunpack.c.l.b16 %v30
    %v56 = vpack.c.b16 %v55, %v54
    %v74 = vunpack.c.l.b16 %v32
    %v75 = vunpack.c.l.b16 %v33
    %v76 = vunpack.c.l.b16 %v34
    %v77 = vunpack.c.l.b16 %v35
    %v78 = vunpack.c.l.b16 %v36
    %v79 = vunpack.c.l.b16 %v37
    %v80 = vunpack.c.l.b16 %v38
    %v81 = vunpack.c.l.b16 %v39
    %v82 = vunpack.c.l.b16 %v40
    %v83 = vunpack.c.l.b16 %v41
    %v84 = vunpack.c.l.b16 %v42
    %v85 = vunpack.c.l.b16 %v43
    %v86 = vunpack.c.l.b16 %v44
    %v87 = vunpack.c.l.b16 %v45
    %v88 = vunpack.c.l.b16 %v46
    %v89 = vunpack.c.l.b16 %v47
    %v90 = vpack.c.b16 %v75, %v74
    %v91 = vpack.c.b16 %v77, %v76
    %v92 = vpack.c.b16 %v79, %v78
    %v93 = vpack.c.b16 %v81, %v80
    %v94 = vpack.c.b16 %v83, %v82
    %v95 = vpack.c.b16 %v85, %v84
    %v96 = vpack.c.b16 %v87, %v86
    %v97 = vpack.c.b16 %v89, %v88
    %106 = vmatprep.subr.bf16.mxu0 0
    %107 = vmatpush1.bf16.msra.mxu0 %v90
    %108 = vmatprep.subr.bf16.mxu0 0
    %109 = vmatpush1.bf16.msra.mxu0 %v91
    %110 = vmatprep.subr.bf16.mxu0 0
    %111 = vmatpush1.bf16.msra.mxu0 %v92
    %112 = vmatprep.subr.bf16.mxu0 0
    %113 = vmatpush1.bf16.msra.mxu0 %v93
    %114 = vmatprep.subr.bf16.mxu0 0
    %115 = vmatpush1.bf16.msra.mxu0 %v94
    %116 = vmatprep.subr.bf16.mxu0 0
    %117 = vmatpush1.bf16.msra.mxu0 %v95
    %118 = vmatprep.subr.bf16.mxu0 0
    %119 = vmatpush1.bf16.msra.mxu0 %v96
    %120 = vmatprep.subr.bf16.mxu0 0
    %121 = vmatpush1.bf16.msra.mxu0 %v97
    %122 = vmatprep.subr.bf16.mxu0 0
    %123 = vmatpush1.bf16.msra.mxu0 0
    %124 = vmatprep.subr.bf16.mxu0 0
    %125 = vmatpush1.bf16.msra.mxu0 0
    %126 = vmatprep.subr.bf16.mxu0 0
    %127 = vmatpush1.bf16.msra.mxu0 0
    %128 = vmatprep.subr.bf16.mxu0 0
    %129 = vmatpush1.bf16.msra.mxu0 0
    %130 = vmatprep.subr.bf16.mxu0 0
    %131 = vmatpush1.bf16.msra.mxu0 0
    %132 = vmatprep.subr.bf16.mxu0 0
    %133 = vmatpush1.bf16.msra.mxu0 0
    %134 = vmatprep.subr.bf16.mxu0 0
    %135 = vmatpush1.bf16.msra.mxu0 0
    %136 = vmatprep.subr.bf16.mxu0 0
    %137 = vmatpush1.bf16.msra.mxu0 0
    %138 = vmatprep.mubr.bf16.mxu0 0
    %139 = vmatmul.mubr.bf16.gmra.mrb[0].mxu0 %v56
    %v140 = vpop.f32.mrb[0].mxu0
    %v141 = vadd.f32 %v51, %v140
    %v142 = vpop.f32.mrb[0].mxu0
    %v143 = vpop.f32.mrb[0].mxu0
    %v144 = vadd.f32 %v51, %v143
    %v145 = vpop.f32.mrb[0].mxu0
    %146 = vdwg.mxu0
    %v147 = vmax.f32 %v141, 0.0
    %v148 = vmax.f32 %v144, 0.0
    %v149 = vpack.c.bf16 %v148, %v147
    %s150 = scalar_lea.vmem [#allocation2], 64
    %v151 = vld [vmem:[%s150] sm:$0xf]
    %v152 = vld [vmem:[%s150 + $0x4] sm:$0xf]
    %v153 = vld [vmem:[%s150 + $0x8] sm:$0xf]
    %v154 = vld [vmem:[%s150 + $0xc] sm:$0xf]
    %v155 = vld [vmem:[%s150 + $0x10] sm:$0xf]
    %v156 = vld [vmem:[%s150 + $0x14] sm:$0xf]
    %v157 = vld [vmem:[%s150 + $0x18] sm:$0xf]
    %v158 = vld [vmem:[%s150 + $0x1c] sm:$0xf]
    %v159 = vld [vmem:[%s150 + $0x20] sm:$0xf]
    %v160 = vld [vmem:[%s150 + $0x24] sm:$0xf]
    %v161 = vld [vmem:[%s150 + $0x28] sm:$0xf]
    %v162 = vld [vmem:[%s150 + $0x2c] sm:$0xf]
    %v163 = vld [vmem:[%s150 + $0x30] sm:$0xf]
    %v164 = vld [vmem:[%s150 + $0x34] sm:$0xf]
    %v165 = vld [vmem:[%s150 + $0x38] sm:$0xf]
    %v166 = vld [vmem:[%s150 + $0x3c] sm:$0xf]
    %v167 = vlaneseq
    %v168 = vshrl.u32 %v167, 7
    %v169 = vsub.s32 1, %v168
    %v170 = vrot.slane %v31, %v169
    %v187 = vunpack.c.l.b16 %v151
    %v188 = vunpack.c.l.b16 %v152
    %v189 = vunpack.c.l.b16 %v153
    %v190 = vunpack.c.l.b16 %v154
    %v191 = vunpack.c.l.b16 %v155
    %v192 = vunpack.c.l.b16 %v156
    %v193 = vunpack.c.l.b16 %v157
    %v194 = vunpack.c.l.b16 %v158
    %v195 = vunpack.c.l.b16 %v159
    %v196 = vunpack.c.l.b16 %v160
    %v197 = vunpack.c.l.b16 %v161
    %v198 = vunpack.c.l.b16 %v162
    %v199 = vunpack.c.l.b16 %v163
    %v200 = vunpack.c.l.b16 %v164
    %v201 = vunpack.c.l.b16 %v165
    %v202 = vunpack.c.l.b16 %v166
    %v203 = vpack.c.b16 %v188, %v187
    %v204 = vpack.c.b16 %v190, %v189
    %v205 = vpack.c.b16 %v192, %v191
    %v206 = vpack.c.b16 %v194, %v193
    %v207 = vpack.c.b16 %v196, %v195
    %v208 = vpack.c.b16 %v198, %v197
    %v209 = vpack.c.b16 %v200, %v199
    %v210 = vpack.c.b16 %v202, %v201
    %219 = vmatprep.subr.bf16.mxu0 0
    %220 = vmatpush1.bf16.msra.mxu0 %v203
    %221 = vmatprep.subr.bf16.mxu0 0
    %222 = vmatpush1.bf16.msra.mxu0 %v204
    %223 = vmatprep.subr.bf16.mxu0 0
    %224 = vmatpush1.bf16.msra.mxu0 %v205
    %225 = vmatprep.subr.bf16.mxu0 0
    %226 = vmatpush1.bf16.msra.mxu0 %v206
    %227 = vmatprep.subr.bf16.mxu0 0
    %228 = vmatpush1.bf16.msra.mxu0 %v207
    %229 = vmatprep.subr.bf16.mxu0 0
    %230 = vmatpush1.bf16.msra.mxu0 %v208
    %231 = vmatprep.subr.bf16.mxu0 0
    %232 = vmatpush1.bf16.msra.mxu0 %v209
    %233 = vmatprep.subr.bf16.mxu0 0
    %234 = vmatpush1.bf16.msra.mxu0 %v210
    %235 = vmatprep.subr.bf16.mxu0 0
    %236 = vmatpush1.bf16.msra.mxu0 0
    %237 = vmatprep.subr.bf16.mxu0 0
    %238 = vmatpush1.bf16.msra.mxu0 0
    %239 = vmatprep.subr.bf16.mxu0 0
    %240 = vmatpush1.bf16.msra.mxu0 0
    %241 = vmatprep.subr.bf16.mxu0 0
    %242 = vmatpush1.bf16.msra.mxu0 0
    %243 = vmatprep.subr.bf16.mxu0 0
    %244 = vmatpush1.bf16.msra.mxu0 0
    %245 = vmatprep.subr.bf16.mxu0 0
    %246 = vmatpush1.bf16.msra.mxu0 0
    %247 = vmatprep.subr.bf16.mxu0 0
    %248 = vmatpush1.bf16.msra.mxu0 0
    %249 = vmatprep.subr.bf16.mxu0 0
    %250 = vmatpush1.bf16.msra.mxu0 0
    %251 = vmatprep.mubr.bf16.mxu0 0
    %252 = vmatmul.mubr.bf16.gmra.mrb[0].mxu0 %v149
    %v253 = vpop.f32.mrb[0].mxu0
    %v254 = vadd.f32 %v170, %v253
    %v255 = vpop.f32.mrb[0].mxu0
    %v256 = vpop.f32.mrb[0].mxu0
    %v257 = vadd.f32 %v170, %v256
    %v258 = vpop.f32.mrb[0].mxu0
    %259 = vdwg.mxu0
    %v260 = vmax.f32 %v254, 0.0
    %v261 = vmax.f32 %v257, 0.0
    %v262 = vpack.c.bf16 %v261, %v260
    %s263 = scalar_lea.vmem [#allocation2], 128
    %v264 = vld [vmem:[%s263] sm:$0xf]
    %v265 = vld [vmem:[%s263 + $0x4] sm:$0xf]
    %v266 = vld [vmem:[%s263 + $0x8] sm:$0xf]
    %v267 = vld [vmem:[%s263 + $0xc] sm:$0xf]
    %v268 = vld [vmem:[%s263 + $0x10] sm:$0xf]
    %v269 = vld [vmem:[%s263 + $0x14] sm:$0xf]
    %v270 = vld [vmem:[%s263 + $0x18] sm:$0xf]
    %v271 = vld [vmem:[%s263 + $0x1c] sm:$0xf]
    %v272 = vld [vmem:[%s263 + $0x20] sm:$0xf]
    %v273 = vld [vmem:[%s263 + $0x24] sm:$0xf]
    %v274 = vld [vmem:[%s263 + $0x28] sm:$0xf]
    %v275 = vld [vmem:[%s263 + $0x2c] sm:$0xf]
    %v276 = vld [vmem:[%s263 + $0x30] sm:$0xf]
    %v277 = vld [vmem:[%s263 + $0x34] sm:$0xf]
    %v278 = vld [vmem:[%s263 + $0x38] sm:$0xf]
    %v279 = vld [vmem:[%s263 + $0x3c] sm:$0xf]
    %v280 = vlaneseq
    %v281 = vshrl.u32 %v280, 7
    %v282 = vsub.s32 2, %v281
    %v283 = vrot.slane %v31, %v282
    %v300 = vunpack.c.l.b16 %v264
    %v301 = vunpack.c.l.b16 %v265
    %v302 = vunpack.c.l.b16 %v266
    %v303 = vunpack.c.l.b16 %v267
    %v304 = vunpack.c.l.b16 %v268
    %v305 = vunpack.c.l.b16 %v269
    %v306 = vunpack.c.l.b16 %v270
    %v307 = vunpack.c.l.b16 %v271
    %v308 = vunpack.c.l.b16 %v272
    %v309 = vunpack.c.l.b16 %v273
    %v310 = vunpack.c.l.b16 %v274
    %v311 = vunpack.c.l.b16 %v275
    %v312 = vunpack.c.l.b16 %v276
    %v313 = vunpack.c.l.b16 %v277
    %v314 = vunpack.c.l.b16 %v278
    %v315 = vunpack.c.l.b16 %v279
    %v316 = vpack.c.b16 %v301, %v300
    %v317 = vpack.c.b16 %v303, %v302
    %v318 = vpack.c.b16 %v305, %v304
    %v319 = vpack.c.b16 %v307, %v306
    %v320 = vpack.c.b16 %v309, %v308
    %v321 = vpack.c.b16 %v311, %v310
    %v322 = vpack.c.b16 %v313, %v312
    %v323 = vpack.c.b16 %v315, %v314
    %332 = vmatprep.subr.bf16.mxu0 0
    %333 = vmatpush1.bf16.msra.mxu0 %v316
    %334 = vmatprep.subr.bf16.mxu0 0
    %335 = vmatpush1.bf16.msra.mxu0 %v317
    %336 = vmatprep.subr.bf16.mxu0 0
    %337 = vmatpush1.bf16.msra.mxu0 %v318
    %338 = vmatprep.subr.bf16.mxu0 0
    %339 = vmatpush1.bf16.msra.mxu0 %v319
    %340 = vmatprep.subr.bf16.mxu0 0
    %341 = vmatpush1.bf16.msra.mxu0 %v320
    %342 = vmatprep.subr.bf16.mxu0 0
    %343 = vmatpush1.bf16.msra.mxu0 %v321
    %344 = vmatprep.subr.bf16.mxu0 0
    %345 = vmatpush1.bf16.msra.mxu0 %v322
    %346 = vmatprep.subr.bf16.mxu0 0
    %347 = vmatpush1.bf16.msra.mxu0 %v323
    %348 = vmatprep.subr.bf16.mxu0 0
    %349 = vmatpush1.bf16.msra.mxu0 0
    %350 = vmatprep.subr.bf16.mxu0 0
    %351 = vmatpush1.bf16.msra.mxu0 0
    %352 = vmatprep.subr.bf16.mxu0 0
    %353 = vmatpush1.bf16.msra.mxu0 0
    %354 = vmatprep.subr.bf16.mxu0 0
    %355 = vmatpush1.bf16.msra.mxu0 0
    %356 = vmatprep.subr.bf16.mxu0 0
    %357 = vmatpush1.bf16.msra.mxu0 0
    %358 = vmatprep.subr.bf16.mxu0 0
    %359 = vmatpush1.bf16.msra.mxu0 0
    %360 = vmatprep.subr.bf16.mxu0 0
    %361 = vmatpush1.bf16.msra.mxu0 0
    %362 = vmatprep.subr.bf16.mxu0 0
    %363 = vmatpush1.bf16.msra.mxu0 0
    %364 = vmatprep.mubr.bf16.mxu0 0
    %365 = vmatmul.mubr.bf16.gmra.mrb[0].mxu0 %v262
    %v366 = vpop.f32.mrb[0].mxu0
    %v367 = vadd.f32 %v283, %v366
    %v368 = vpop.f32.mrb[0].mxu0
    %v369 = vpop.f32.mrb[0].mxu0
    %v370 = vadd.f32 %v283, %v369
    %v371 = vpop.f32.mrb[0].mxu0
    %372 = vdwg.mxu0
    %v373 = vmax.f32 %v367, 0.0
    %v374 = vmax.f32 %v370, 0.0
    %v375 = vpack.c.bf16 %v374, %v373
    %s376 = scalar_lea.vmem [#allocation2], 192
    %v377 = vld [vmem:[%s376] sm:$0xf]
    %v378 = vld [vmem:[%s376 + $0x4] sm:$0xf]
    %v379 = vld [vmem:[%s376 + $0x8] sm:$0xf]
    %v380 = vld [vmem:[%s376 + $0xc] sm:$0xf]
    %v381 = vld [vmem:[%s376 + $0x10] sm:$0xf]
    %v382 = vld [vmem:[%s376 + $0x14] sm:$0xf]
    %v383 = vld [vmem:[%s376 + $0x18] sm:$0xf]
    %v384 = vld [vmem:[%s376 + $0x1c] sm:$0xf]
    %v385 = vld [vmem:[%s376 + $0x20] sm:$0xf]
    %v386 = vld [vmem:[%s376 + $0x24] sm:$0xf]
    %v387 = vld [vmem:[%s376 + $0x28] sm:$0xf]
    %v388 = vld [vmem:[%s376 + $0x2c] sm:$0xf]
    %v389 = vld [vmem:[%s376 + $0x30] sm:$0xf]
    %v390 = vld [vmem:[%s376 + $0x34] sm:$0xf]
    %v391 = vld [vmem:[%s376 + $0x38] sm:$0xf]
    %v392 = vld [vmem:[%s376 + $0x3c] sm:$0xf]
    %v393 = vlaneseq
    %v394 = vshrl.u32 %v393, 7
    %v395 = vsub.s32 3, %v394
    %v396 = vrot.slane %v31, %v395
    %v413 = vunpack.c.l.b16 %v377
    %v414 = vunpack.c.l.b16 %v378
    %v415 = vunpack.c.l.b16 %v379
    %v416 = vunpack.c.l.b16 %v380
    %v417 = vunpack.c.l.b16 %v381
    %v418 = vunpack.c.l.b16 %v382
    %v419 = vunpack.c.l.b16 %v383
    %v420 = vunpack.c.l.b16 %v384
    %v421 = vunpack.c.l.b16 %v385
    %v422 = vunpack.c.l.b16 %v386
    %v423 = vunpack.c.l.b16 %v387
    %v424 = vunpack.c.l.b16 %v388
    %v425 = vunpack.c.l.b16 %v389
    %v426 = vunpack.c.l.b16 %v390
    %v427 = vunpack.c.l.b16 %v391
    %v428 = vunpack.c.l.b16 %v392
    %v429 = vpack.c.b16 %v414, %v413
    %v430 = vpack.c.b16 %v416, %v415
    %v431 = vpack.c.b16 %v418, %v417
    %v432 = vpack.c.b16 %v420, %v419
    %v433 = vpack.c.b16 %v422, %v421
    %v434 = vpack.c.b16 %v424, %v423
    %v435 = vpack.c.b16 %v426, %v425
    %v436 = vpack.c.b16 %v428, %v427
    %445 = vmatprep.subr.bf16.mxu0 0
    %446 = vmatpush1.bf16.msra.mxu0 %v429
    %447 = vmatprep.subr.bf16.mxu0 0
    %448 = vmatpush1.bf16.msra.mxu0 %v430
    %449 = vmatprep.subr.bf16.mxu0 0
    %450 = vmatpush1.bf16.msra.mxu0 %v431
    %451 = vmatprep.subr.bf16.mxu0 0
    %452 = vmatpush1.bf16.msra.mxu0 %v432
    %453 = vmatprep.subr.bf16.mxu0 0
    %454 = vmatpush1.bf16.msra.mxu0 %v433
    %455 = vmatprep.subr.bf16.mxu0 0
    %456 = vmatpush1.bf16.msra.mxu0 %v434
    %457 = vmatprep.subr.bf16.mxu0 0
    %458 = vmatpush1.bf16.msra.mxu0 %v435
    %459 = vmatprep.subr.bf16.mxu0 0
    %460 = vmatpush1.bf16.msra.mxu0 %v436
    %461 = vmatprep.subr.bf16.mxu0 0
    %462 = vmatpush1.bf16.msra.mxu0 0
    %463 = vmatprep.subr.bf16.mxu0 0
    %464 = vmatpush1.bf16.msra.mxu0 0
    %465 = vmatprep.subr.bf16.mxu0 0
    %466 = vmatpush1.bf16.msra.mxu0 0
    %467 = vmatprep.subr.bf16.mxu0 0
    %468 = vmatpush1.bf16.msra.mxu0 0
    %469 = vmatprep.subr.bf16.mxu0 0
    %470 = vmatpush1.bf16.msra.mxu0 0
    %471 = vmatprep.subr.bf16.mxu0 0
    %472 = vmatpush1.bf16.msra.mxu0 0
    %473 = vmatprep.subr.bf16.mxu0 0
    %474 = vmatpush1.bf16.msra.mxu0 0
    %475 = vmatprep.subr.bf16.mxu0 0
    %476 = vmatpush1.bf16.msra.mxu0 0
    %477 = vmatprep.mubr.bf16.mxu0 0
    %478 = vmatmul.mubr.bf16.gmra.mrb[0].mxu0 %v375
    %v479 = vpop.f32.mrb[0].mxu0
    %v480 = vadd.f32 %v396, %v479
    %v481 = vpop.f32.mrb[0].mxu0
    %v482 = vpop.f32.mrb[0].mxu0
    %v483 = vadd.f32 %v396, %v482
    %v484 = vpop.f32.mrb[0].mxu0
    %485 = vdwg.mxu0
    %v486 = vmax.f32 %v480, 0.0
    %v487 = vmax.f32 %v483, 0.0
    %v488 = vpack.c.bf16 %v487, %v486
    %s489 = scalar_lea.vmem [#allocation2], 256
    %v490 = vld [vmem:[%s489] sm:$0xf]
    %v491 = vld [vmem:[%s489 + $0x4] sm:$0xf]
    %v492 = vld [vmem:[%s489 + $0x8] sm:$0xf]
    %v493 = vld [vmem:[%s489 + $0xc] sm:$0xf]
    %v494 = vld [vmem:[%s489 + $0x10] sm:$0xf]
    %v495 = vld [vmem:[%s489 + $0x14] sm:$0xf]
    %v496 = vld [vmem:[%s489 + $0x18] sm:$0xf]
    %v497 = vld [vmem:[%s489 + $0x1c] sm:$0xf]
    %v498 = vld [vmem:[%s489 + $0x20] sm:$0xf]
    %v499 = vld [vmem:[%s489 + $0x24] sm:$0xf]
    %v500 = vld [vmem:[%s489 + $0x28] sm:$0xf]
    %v501 = vld [vmem:[%s489 + $0x2c] sm:$0xf]
    %v502 = vld [vmem:[%s489 + $0x30] sm:$0xf]
    %v503 = vld [vmem:[%s489 + $0x34] sm:$0xf]
    %v504 = vld [vmem:[%s489 + $0x38] sm:$0xf]
    %v505 = vld [vmem:[%s489 + $0x3c] sm:$0xf]
    %s506 = scalar_lea.vmem [#allocation2], 320
    %v507 = vld [vmem:[%s506] sm:$0xf]
    %v508 = vld [vmem:[%s506 + $0x4] sm:$0xf]
    %v509 = vld [vmem:[%s506 + $0x8] sm:$0xf]
    %v510 = vld [vmem:[%s506 + $0xc] sm:$0xf]
    %v511 = vld [vmem:[%s506 + $0x10] sm:$0xf]
    %v512 = vld [vmem:[%s506 + $0x14] sm:$0xf]
    %v513 = vld [vmem:[%s506 + $0x18] sm:$0xf]
    %v514 = vld [vmem:[%s506 + $0x1c] sm:$0xf]
    %v515 = vld [vmem:[%s506 + $0x20] sm:$0xf]
    %v516 = vld [vmem:[%s506 + $0x24] sm:$0xf]
    %v517 = vld [vmem:[%s506 + $0x28] sm:$0xf]
    %v518 = vld [vmem:[%s506 + $0x2c] sm:$0xf]
    %v519 = vld [vmem:[%s506 + $0x30] sm:$0xf]
    %v520 = vld [vmem:[%s506 + $0x34] sm:$0xf]
    %v521 = vld [vmem:[%s506 + $0x38] sm:$0xf]
    %v522 = vld [vmem:[%s506 + $0x3c] sm:$0xf]
    %v539 = vunpack.c.l.b16 %v507
    %v540 = vunpack.c.l.b16 %v508
    %v541 = vunpack.c.l.b16 %v509
    %v542 = vunpack.c.l.b16 %v510
    %v543 = vunpack.c.l.b16 %v511
    %v544 = vunpack.c.l.b16 %v512
    %v545 = vunpack.c.l.b16 %v513
    %v546 = vunpack.c.l.b16 %v514
    %v547 = vunpack.c.l.b16 %v515
    %v548 = vunpack.c.l.b16 %v516
    %v549 = vunpack.c.l.b16 %v517
    %v550 = vunpack.c.l.b16 %v518
    %v551 = vunpack.c.l.b16 %v519
    %v552 = vunpack.c.l.b16 %v520
    %v553 = vunpack.c.l.b16 %v521
    %v554 = vunpack.c.l.b16 %v522
    %v555 = vpack.c.b16 %v540, %v539
    %v556 = vpack.c.b16 %v542, %v541
    %v557 = vpack.c.b16 %v544, %v543
    %v558 = vpack.c.b16 %v546, %v545
    %v559 = vpack.c.b16 %v548, %v547
    %v560 = vpack.c.b16 %v550, %v549
    %v561 = vpack.c.b16 %v552, %v551
    %v562 = vpack.c.b16 %v554, %v553
    %571 = vmatprep.subr.bf16.mxu0 0
    %572 = vmatpush1.bf16.msra.mxu0 %v555
    %573 = vmatprep.subr.bf16.mxu0 0
    %574 = vmatpush1.bf16.msra.mxu0 %v556
    %575 = vmatprep.subr.bf16.mxu0 0
    %576 = vmatpush1.bf16.msra.mxu0 %v557
    %577 = vmatprep.subr.bf16.mxu0 0
    %578 = vmatpush1.bf16.msra.mxu0 %v558
    %579 = vmatprep.subr.bf16.mxu0 0
    %580 = vmatpush1.bf16.msra.mxu0 %v559
    %581 = vmatprep.subr.bf16.mxu0 0
    %582 = vmatpush1.bf16.msra.mxu0 %v560
    %583 = vmatprep.subr.bf16.mxu0 0
    %584 = vmatpush1.bf16.msra.mxu0 %v561
    %585 = vmatprep.subr.bf16.mxu0 0
    %586 = vmatpush1.bf16.msra.mxu0 %v562
    %587 = vmatprep.subr.bf16.mxu0 0
    %588 = vmatpush1.bf16.msra.mxu0 0
    %589 = vmatprep.subr.bf16.mxu0 0
    %590 = vmatpush1.bf16.msra.mxu0 0
    %591 = vmatprep.subr.bf16.mxu0 0
    %592 = vmatpush1.bf16.msra.mxu0 0
    %593 = vmatprep.subr.bf16.mxu0 0
    %594 = vmatpush1.bf16.msra.mxu0 0
    %595 = vmatprep.subr.bf16.mxu0 0
    %596 = vmatpush1.bf16.msra.mxu0 0
    %597 = vmatprep.subr.bf16.mxu0 0
    %598 = vmatpush1.bf16.msra.mxu0 0
    %599 = vmatprep.subr.bf16.mxu0 0
    %600 = vmatpush1.bf16.msra.mxu0 0
    %601 = vmatprep.subr.bf16.mxu0 0
    %602 = vmatpush1.bf16.msra.mxu0 0
    %603 = vmatprep.mubr.bf16.mxu0 0
    %604 = vmatmul.mubr.bf16.gmra.mrb[0].mxu0 %v56
    %v605 = vpop.f32.mrb[0].mxu0
    %v606 = vadd.f32 0.0, %v605
    %v607 = vpop.f32.mrb[0].mxu0
    %v608 = vpop.f32.mrb[0].mxu0
    %v609 = vadd.f32 0.0, %v608
    %v610 = vpop.f32.mrb[0].mxu0
    %611 = vdwg.mxu0
    %v628 = vunpack.c.l.b16 %v490
    %v629 = vunpack.c.l.b16 %v491
    %v630 = vunpack.c.l.b16 %v492
    %v631 = vunpack.c.l.b16 %v493
    %v632 = vunpack.c.l.b16 %v494
    %v633 = vunpack.c.l.b16 %v495
    %v634 = vunpack.c.l.b16 %v496
    %v635 = vunpack.c.l.b16 %v497
    %v636 = vunpack.c.l.b16 %v498
    %v637 = vunpack.c.l.b16 %v499
    %v638 = vunpack.c.l.b16 %v500
    %v639 = vunpack.c.l.b16 %v501
    %v640 = vunpack.c.l.b16 %v502
    %v641 = vunpack.c.l.b16 %v503
    %v642 = vunpack.c.l.b16 %v504
    %v643 = vunpack.c.l.b16 %v505
    %v644 = vpack.c.b16 %v629, %v628
    %v645 = vpack.c.b16 %v631, %v630
    %v646 = vpack.c.b16 %v633, %v632
    %v647 = vpack.c.b16 %v635, %v634
    %v648 = vpack.c.b16 %v637, %v636
    %v649 = vpack.c.b16 %v639, %v638
    %v650 = vpack.c.b16 %v641, %v640
    %v651 = vpack.c.b16 %v643, %v642
    %660 = vmatprep.subr.bf16.mxu0 0
    %661 = vmatpush1.bf16.msra.mxu0 %v644
    %662 = vmatprep.subr.bf16.mxu0 0
    %663 = vmatpush1.bf16.msra.mxu0 %v645
    %664 = vmatprep.subr.bf16.mxu0 0
    %665 = vmatpush1.bf16.msra.mxu0 %v646
    %666 = vmatprep.subr.bf16.mxu0 0
    %667 = vmatpush1.bf16.msra.mxu0 %v647
    %668 = vmatprep.subr.bf16.mxu0 0
    %669 = vmatpush1.bf16.msra.mxu0 %v648
    %670 = vmatprep.subr.bf16.mxu0 0
    %671 = vmatpush1.bf16.msra.mxu0 %v649
    %672 = vmatprep.subr.bf16.mxu0 0
    %673 = vmatpush1.bf16.msra.mxu0 %v650
    %674 = vmatprep.subr.bf16.mxu0 0
    %675 = vmatpush1.bf16.msra.mxu0 %v651
    %676 = vmatprep.subr.bf16.mxu0 0
    %677 = vmatpush1.bf16.msra.mxu0 0
    %678 = vmatprep.subr.bf16.mxu0 0
    %679 = vmatpush1.bf16.msra.mxu0 0
    %680 = vmatprep.subr.bf16.mxu0 0
    %681 = vmatpush1.bf16.msra.mxu0 0
    %682 = vmatprep.subr.bf16.mxu0 0
    %683 = vmatpush1.bf16.msra.mxu0 0
    %684 = vmatprep.subr.bf16.mxu0 0
    %685 = vmatpush1.bf16.msra.mxu0 0
    %686 = vmatprep.subr.bf16.mxu0 0
    %687 = vmatpush1.bf16.msra.mxu0 0
    %688 = vmatprep.subr.bf16.mxu0 0
    %689 = vmatpush1.bf16.msra.mxu0 0
    %690 = vmatprep.subr.bf16.mxu0 0
    %691 = vmatpush1.bf16.msra.mxu0 0
    %692 = vmatprep.mubr.bf16.mxu0 0
    %693 = vmatmul.mubr.bf16.gmra.mrb[0].mxu0 %v488
    %v694 = vpop.f32.mrb[0].mxu0
    %v695 = vadd.f32 %v606, %v694
    %v696 = vpop.f32.mrb[0].mxu0
    %v697 = vpop.f32.mrb[0].mxu0
    %v698 = vadd.f32 %v609, %v697
    %v699 = vpop.f32.mrb[0].mxu0
    %700 = vdwg.mxu0
    %v701 = vlaneseq
    %v702 = vshrl.u32 %v701, 7
    %v703 = vsub.s32 4, %v702
    %v704 = vrot.slane %v31, %v703
    %v705 = vadd.f32 %v695, %v704
    %v706 = vadd.f32 %v698, %v704
    %v707 = vlaneseq
    %v708 = vand.u32 %v707, 127
    %vm709 = vcmp.lt.s32.totalorder %v708, 4
    %v710 = vsel %vm709, %v705, -inf
    %v711 = vsel %vm709, %v706, -inf
    %712 = vmax.xlane.f32.xlu0 %v710
    %v713 = vpop.xlane.xlu0 %712
    %714 = vmax.xlane.f32.xlu0 %v711
    %v715 = vpop.xlane.xlu0 %714
    %v716 = vsub.f32 %v705, %v713
    %v717 = vsub.f32 %v706, %v715
    %v718 = vmul.f32 %v716, 1.442695
    %v719 = vpow.pop %v718
    %v720 = vmul.f32 %v717, 1.442695
    %v721 = vpow.pop %v720
    %v722 = vsel %vm709, %v719, 0.0
    %v723 = vsel %vm709, %v721, 0.0
    %724 = vadd.xlane.f32.xlu0 %v722
    %v725 = vpop.xlane.xlu0 %724
    %726 = vadd.xlane.f32.xlu0 %v723
    %v727 = vpop.xlane.xlu0 %726
    %v728 = vlog2.pop %v725
    %v729 = vmul.f32 %v728, 0.6931472
    %v730 = vlog2.pop %v727
    %v731 = vmul.f32 %v730, 0.6931472
    %v732 = vsub.f32 %v716, %v729
    %v733 = vsub.f32 %v717, %v731
    %vm734 = vcmp.eq.s32.totalorder %v708, 4
    %v735 = vsel %vm734, %v705, 0.0
    %v736 = vsel %vm734, %v706, 0.0
    %v737 = vsel %vm709, %v732, %v735
    %v738 = vsel %vm709, %v733, %v736
    %vm739 = vcmask 64512
    %740 = vst.msk [vmem:[%s3] sm:$0xff] %vm739, %v737
    %741 = vst.msk [vmem:[%s3 + $0x8] sm:$0xff] %vm739, %v738
    // Predicated region
    $region18: #{my_model_forward.1} parent=1 // pred_check
      _
    $region19: #{my_model_forward.1} parent=1 // pred_check_branch
      %743 = sbr.rel (0) target = $region21
    $region20: #{my_model_forward.1} parent=1 // pred_region
      _
    $region21: #{my_model_forward.1} parent=1 // pred_fallthru
      _
    // Predicated region
    $region22: #{my_model_forward.1} parent=1 // pred_check
      _
    $region23: #{my_model_forward.1} parent=1 // pred_check_branch
      %745 = sbr.rel (0) target = $region25
    $region24: #{my_model_forward.1} parent=1 // pred_region
      _
    $region25: #{my_model_forward.1} parent=1 // pred_fallthru
      _
    %746 = vsyncpa [#allocation3], 1

</llo_original>
